<compile_context>
chip_gen: v6e
topology: v6e:2x2x1
jax: 0.10.0
libtpu: 0.0.40
codegen_flags: <defaults>
</compile_context>

<pallas_src>
import functools

import jax
import jax.numpy as jnp
from jax.experimental import pallas as pl
from jax.experimental.pallas import tpu as pltpu


def _round_up(x: int, m: int) -> int:
    return ((x + m - 1) // m) * m


def _vmem_capacity_bytes() -> int:
    """Generation-aware VMEM capacity (128 MiB on v5e/v6e, 64 MiB on v7x)."""
    try:
        info = pltpu.get_tpu_info()
        cap = int(getattr(info, "vmem_capacity_bytes", 0) or 0)
        if cap > 0:
            return cap
    except Exception:
        pass
    return 64 * 1024 * 1024  # conservative fallback (v7x per-core VMEM)


def _attn_kernel(q_ref, v_ref, ctx_ref, attn_ref, *, mxu_dtype):
    # q_ref: (TB, TQ, H)   v_ref: (TB, S, H)
    # ctx_ref: (TB, TQ, H) attn_ref: (TB, TQ, S)
    q = q_ref[...].astype(mxu_dtype)
    v = v_ref[...].astype(mxu_dtype)

    # score = q @ v^T, contracting H directly (no transpose of v needed).
    # No 1/sqrt(H) scaling: the PyTorch module applies none.
    score = jnp.einsum("bqh,bsh->bqs", q, v,
                       preferred_element_type=jnp.float32)          # (TB, TQ, S) f32

    # Numerically stable softmax over the full S row (no padded key columns exist:
    # the V block uses the full S, so no masking is required).
    m = jnp.max(score, axis=-1, keepdims=True)
    p = jnp.exp(score - m)
    denom = jnp.sum(p, axis=-1, keepdims=True)
    inv = pl.reciprocal(denom, approx=True)      # EUP slot (cheap)
    inv = inv * (2.0 - denom * inv)              # one Newton step -> full f32 accuracy
    p = p * inv                                  # (TB, TQ, S) f32 probabilities

    # context = attn @ v  (bf16 MXU inputs, f32 accumulation).
    ctx = jnp.einsum("bqs,bsh->bqh", p.astype(mxu_dtype), v,
                     preferred_element_type=jnp.float32)            # (TB, TQ, H) f32

    attn_ref[...] = p.astype(attn_ref.dtype)
    ctx_ref[...] = ctx.astype(ctx_ref.dtype)


def dot_product_attention(query, value, *, mxu_dtype=None):
    """Pallas DotProductAttention.forward.

    query: (B, Q, H), value: (B, S, H) -> (context (B, Q, H), attn (B, Q, S))
    """
    B, Q, H = query.shape
    Bv, S, Hv = value.shape
    assert B == Bv and H == Hv, "query/value batch and hidden dims must match"

    dtype = query.dtype
    itemsize = jnp.dtype(dtype).itemsize
    if mxu_dtype is None:
        # Numerics-visible fast path (see module docstring).
        mxu_dtype = jnp.bfloat16 if dtype == jnp.float32 else dtype

    # ---- Generation-aware VMEM budget (v5e/v6e: ~96 MiB, v7x: ~48 MiB) ----
    vmem_cap = _vmem_capacity_bytes()
    budget = int(0.75 * vmem_cap)
    tq_cap = 512 if vmem_cap >= 96 * 1024 * 1024 else 256

    def _vmem_bytes(tb, tq):
        # Double-buffered q/v/ctx/attn blocks + ~2x (TB,TQ,S) f32 live temporaries
        # (score and prob reuse the same buffer; see kernel).
        blocks = 2 * tb * (tq * H + S * H + tq * H + tq * S) * itemsize
        live = 2 * tb * tq * S * 4
        return blocks + live

    def _pick_tq(tb):
        tq = Q if Q <= tq_cap else tq_cap
        while _vmem_bytes(tb, tq) > budget and tq > 8:
            nxt = _round_up(max(8, tq // 2), 8)
            if nxt >= tq:
                break
            tq = nxt
        return tq

    # Batch tiling: for small Q (decode-like shapes) fold several batches into one
    # grid step so the MXU sees a reasonable M and per-step overhead / DMA size is
    # amortized.  TB must divide B and fit the VMEM budget.
    tb_target = 1 if Q >= 128 else max(1, min(B, 256 // max(Q, 1)))
    TB = 1
    for d in range(1, B + 1):
        if B % d == 0 and d <= tb_target and _vmem_bytes(d, _pick_tq(d)) <= budget:
            TB = d
    TQ = _pick_tq(TB)
    # TODO(synk): for very long S where even (TB=1, TQ=8) exceeds the budget because
    # the (S, H) V block is too large, add a trailing "arbitrary" S grid axis with a
    # flash-style online softmax + attn rescale pass instead of a VMEM-resident V.

    # Only the Q axis is ever padded (and only when TQ does not divide Q).  S and H
    # use full-dim blocks, so there is no pad/slice HBM pass over the large attn
    # output and no key-column masking in the kernel.
    Qp = _round_up(Q, TQ)
    q_in = query if Qp == Q else jnp.pad(query, ((0, 0), (0, Qp - Q), (0, 0)))

    grid = (B // TB, Qp // TQ)

    grid_spec = pltpu.PrefetchScalarGridSpec(
        num_scalar_prefetch=0,
        grid=grid,
        in_specs=[
            pl.BlockSpec((TB, TQ, H), lambda bi, qi: (bi, qi, 0)),
            # V's block index depends only on the batch axis -> it stays
            # VMEM-resident across all Q tiles of a batch group (no re-DMA).
            pl.BlockSpec((TB, S, H), lambda bi, qi: (bi, 0, 0)),
        ],
        out_specs=[
            pl.BlockSpec((TB, TQ, H), lambda bi, qi: (bi, qi, 0)),
            pl.BlockSpec((TB, TQ, S), lambda bi, qi: (bi, qi, 0)),
        ],
    )

    need = _vmem_bytes(TB, TQ)
    vmem_limit = int(min(max(int(1.5 * need), 32 * 1024 * 1024),
                         int(0.78 * vmem_cap)))

    # Batch axis goes on the cross-TensorCore parallel dimension so two v7x cores
    # never fetch the same V block; Q tiles stay on one core.  If there is only one
    # batch tile, let the Q axis be split instead of idling a core.
    if B // TB == 1:
        dim_sem = ("parallel", "parallel")
    else:
        dim_sem = ("parallel", "arbitrary")

    cost = pl.CostEstimate(
        flops=4 * B * Q * S * H,                       # two matmuls
        transcendentals=B * Q * S + B * Q,             # exp + reciprocal
        bytes_accessed=(query.size + value.size + B * Q * H + B * Q * S) * itemsize,
    )

    ctx, attn = pl.pallas_call(
        functools.partial(_attn_kernel, mxu_dtype=mxu_dtype),
        out_shape=(
            jax.ShapeDtypeStruct((B, Qp, H), dtype),   # context
            jax.ShapeDtypeStruct((B, Qp, S), dtype),   # attn
        ),
        grid_spec=grid_spec,
        compiler_params=pltpu.CompilerParams(
            dimension_semantics=dim_sem,
            vmem_limit_bytes=vmem_limit,
        ),
        cost_estimate=cost,
    )(q_in, value)

    if Qp != Q:
        ctx = ctx[:, :Q]
        attn = attn[:, :Q]
    return ctx, attn


def init_unused_params(hidden_dim, key):
    """DotProductAttention.__init__ creates LayerNorm(hidden_dim) and
    Linear(2*hidden_dim, hidden_dim), but forward() never uses them.
    Initialized only to mirror the module's parameter set."""
    k1, k2 = jax.random.split(key)
    bound = 1.0 / jnp.sqrt(2.0 * hidden_dim)
    return {
        "ln_gamma": jnp.ones((hidden_dim,), jnp.float32),
        "ln_beta": jnp.zeros((hidden_dim,), jnp.float32),
        "out_w": jax.random.uniform(k1, (hidden_dim, 2 * hidden_dim), jnp.float32, -bound, bound),
        "out_b": jax.random.uniform(k2, (hidden_dim,), jnp.float32, -bound, bound),
    }


def _reference_matched(query, value, mxu_dtype):
    """Plain-jnp reference using the same MXU input dtype as the kernel."""
    qm = query.astype(mxu_dtype)
    vm = value.astype(mxu_dtype)
    score = jnp.einsum("bqh,bsh->bqs", qm, vm, preferred_element_type=jnp.float32)
    attn = jax.nn.softmax(score, axis=-1)
    ctx = jnp.einsum("bqs,bsh->bqh", attn.astype(mxu_dtype), vm,
                     preferred_element_type=jnp.float32)
    return ctx.astype(query.dtype), attn.astype(query.dtype)


if __name__ == "__main__":
    key = jax.random.PRNGKey(0)
    kq, kv, kp = jax.random.split(key, 3)

    B, Q, S, H = 2, 8, 8, 32
    query = jax.random.normal(kq, (B, Q, H), jnp.float32)
    value = jax.random.normal(kv, (B, S, H), jnp.float32)

    # Parameters defined in __init__ but unused in forward (kept for parity).
    _params = init_unused_params(H, kp)

    context, attn = dot_product_attention(query, value)
    context = jax.block_until_ready(context)
    attn = jax.block_until_ready(attn)

    assert context.shape == (B, Q, H) and attn.shape == (B, Q, S)
    assert context.dtype == query.dtype and attn.dtype == query.dtype

    # Softmax rows must sum to 1.
    assert jnp.allclose(jnp.sum(attn, axis=-1), 1.0, atol=1e-3)

    # Compare against a matched-precision plain-jnp reference (same bf16 MXU inputs,
    # f32 accumulation / softmax).  Context tolerance is looser because both sides
    # independently re-round the probabilities to bf16 before the second matmul.
    ref_ctx, ref_attn = _reference_matched(query, value, jnp.bfloat16)
    assert jnp.allclose(attn, ref_attn, atol=1e-3, rtol=1e-3)
    assert jnp.allclose(context, ref_ctx, atol=1e-2, rtol=1e-2)

    print("KERNEL_OK")
</pallas_src>

<mosaic_0001>
module attributes {stable_mosaic.version = 11 : i64} {
  func.func @_attn_kernel(%arg0: i32, %arg1: i32, %arg2: memref<2x8x32xf32, #tpu.memory_space<vmem>>, %arg3: memref<2x8x32xf32, #tpu.memory_space<vmem>>, %arg4: memref<2x8x32xf32, #tpu.memory_space<vmem>>, %arg5: memref<2x8x8xf32, #tpu.memory_space<vmem>>) attributes {dimension_semantics = [#tpu.dimension_semantics<parallel>, #tpu.dimension_semantics<parallel>], iteration_bounds = array<i64: 1, 1>, scalar_prefetch = 0 : i64, scratch_operands = 0 : i64, tpu.core_type = #tpu.core_type<tc>, window_params = [{transform_indices = @transform_0, window_bounds = array<i64: 2, 8, 32>}, {transform_indices = @transform_1, window_bounds = array<i64: 2, 8, 32>}, {transform_indices = @transform_2, window_bounds = array<i64: 2, 8, 32>}, {transform_indices = @transform_3, window_bounds = array<i64: 2, 8, 8>}]} {
    %c0 = arith.constant 0 : index
    %c0_0 = arith.constant 0 : index
    %c0_1 = arith.constant 0 : index
    %0 = vector.load %arg2[%c0, %c0_0, %c0_1] : memref<2x8x32xf32, #tpu.memory_space<vmem>>, vector<2x8x32xf32>
    %1 = arith.truncf %0 : vector<2x8x32xf32> to vector<2x8x32xbf16>
    %c0_2 = arith.constant 0 : index
    %c0_3 = arith.constant 0 : index
    %c0_4 = arith.constant 0 : index
    %2 = vector.load %arg3[%c0_2, %c0_3, %c0_4] : memref<2x8x32xf32, #tpu.memory_space<vmem>>, vector<2x8x32xf32>
    %3 = arith.truncf %2 : vector<2x8x32xf32> to vector<2x8x32xbf16>
    "tpu.trace_start"() <{level = 10 : i32, message = "bqh,bsh->bqs"}> : () -> ()
    %cst = arith.constant dense<0.000000e+00> : vector<2x8x8xf32>
    %4 = tpu.matmul %1, %3, %cst {dimension_numbers = #tpu.dot_dimension_numbers<[2], [2], [1], [1], [0, 0, 0, 1, 1, 1], [0], [0]>} : vector<2x8x32xbf16>, vector<2x8x32xbf16>, vector<2x8x8xf32> -> vector<2x8x8xf32>
    "tpu.trace_stop"() : () -> ()
    %cst_5 = arith.constant dense<0xFF800000> : vector<2x8xf32>
    %5 = vector.multi_reduction <maximumf>, %4, %cst_5 [2] : vector<2x8x8xf32> to vector<2x8xf32>
    %6 = vector.shape_cast %5 : vector<2x8xf32> to vector<2x8x1xf32>
    %7 = vector.broadcast %6 : vector<2x8x1xf32> to vector<2x8x8xf32>
    %8 = arith.subf %4, %7 : vector<2x8x8xf32>
    %9 = math.exp %8 : vector<2x8x8xf32>
    %cst_6 = arith.constant dense<0.000000e+00> : vector<2x8xf32>
    %10 = vector.multi_reduction <add>, %9, %cst_6 [2] : vector<2x8x8xf32> to vector<2x8xf32>
    %11 = vector.shape_cast %10 : vector<2x8xf32> to vector<2x8x1xf32>
    %12 = tpu.reciprocal %11 {approx = true} : vector<2x8x1xf32> -> vector<2x8x1xf32>
    %13 = arith.mulf %11, %12 : vector<2x8x1xf32>
    %cst_7 = arith.constant 2.000000e+00 : f32
    %14 = vector.broadcast %cst_7 : f32 to vector<2x8x1xf32>
    %15 = arith.subf %14, %13 : vector<2x8x1xf32>
    %16 = arith.mulf %12, %15 : vector<2x8x1xf32>
    %17 = vector.broadcast %16 : vector<2x8x1xf32> to vector<2x8x8xf32>
    %18 = arith.mulf %9, %17 : vector<2x8x8xf32>
    %19 = arith.truncf %18 : vector<2x8x8xf32> to vector<2x8x8xbf16>
    "tpu.trace_start"() <{level = 10 : i32, message = "bqs,bsh->bqh"}> : () -> ()
    %cst_8 = arith.constant dense<0.000000e+00> : vector<2x8x32xf32>
    %20 = tpu.matmul %19, %3, %cst_8 {dimension_numbers = #tpu.dot_dimension_numbers<[2], [1], [1], [2], [0, 0, 0, 1, 1, 2], [0], [0]>} : vector<2x8x8xbf16>, vector<2x8x32xbf16>, vector<2x8x32xf32> -> vector<2x8x32xf32>
    "tpu.trace_stop"() : () -> ()
    %c0_9 = arith.constant 0 : index
    %c0_10 = arith.constant 0 : index
    %c0_11 = arith.constant 0 : index
    %21 = vector.load %arg5[%c0_9, %c0_10, %c0_11] : memref<2x8x8xf32, #tpu.memory_space<vmem>>, vector<2x8x8xf32>
    tpu.vector_store %arg5[%c0_9, %c0_10, %c0_11], %18 {strides = array<i32>} : memref<2x8x8xf32, #tpu.memory_space<vmem>>, vector<2x8x8xf32>,
    %c0_12 = arith.constant 0 : index
    %c0_13 = arith.constant 0 : index
    %c0_14 = arith.constant 0 : index
    %22 = vector.load %arg4[%c0_12, %c0_13, %c0_14] : memref<2x8x32xf32, #tpu.memory_space<vmem>>, vector<2x8x32xf32>
    tpu.vector_store %arg4[%c0_12, %c0_13, %c0_14], %20 {strides = array<i32>} : memref<2x8x32xf32, #tpu.memory_space<vmem>>, vector<2x8x32xf32>,
    return
  }
  func.func @transform_0(%arg0: i32, %arg1: i32) -> (i32, i32, i32) {
    %c0_i32 = arith.constant 0 : i32
    %c0_i32_0 = arith.constant 0 : i32
    return %arg0, %arg1, %c0_i32 : i32, i32, i32
  }
  func.func @transform_1(%arg0: i32, %arg1: i32) -> (i32, i32, i32) {
    %c0_i32 = arith.constant 0 : i32
    %c0_i32_0 = arith.constant 0 : i32
    %c0_i32_1 = arith.constant 0 : i32
    return %arg0, %c0_i32, %c0_i32_0 : i32, i32, i32
  }
  func.func @transform_2(%arg0: i32, %arg1: i32) -> (i32, i32, i32) {
    %c0_i32 = arith.constant 0 : i32
    %c0_i32_0 = arith.constant 0 : i32
    return %arg0, %arg1, %c0_i32 : i32, i32, i32
  }
  func.func @transform_3(%arg0: i32, %arg1: i32) -> (i32, i32, i32) {
    %c0_i32 = arith.constant 0 : i32
    %c0_i32_0 = arith.constant 0 : i32
    return %arg0, %arg1, %c0_i32 : i32, i32, i32
  }
}

</mosaic_0001>

<llo_original>
// kernel: tpu_custom_call.1
$region0: #{tpu_custom_call.1}
  #allocation0 [shape = 'u32[]', space=smem, size = 0x4, offset = 0x4, fixed_abs, tag = 'smem constant byte address 0x4 - core index']
  #allocation1 [shape = 'u32[144,128]{1,0:T(1,128)}', space=vmem, size = 0x12000, scoped, tag = 'internal scratch']
  %s0 = inlined_call_operand.hbm [shape: f32[2,8,32], index: 0, kind: input, shape index: {}]
  %s1 = inlined_call_operand.hbm [shape: f32[2,8,32], index: 1, kind: input, shape index: {}]
  %s2 = inlined_call_operand.hbm [shape: f32[2,8,32], index: 2, kind: output, shape index: {0}]
  %s3 = inlined_call_operand.hbm [shape: f32[2,8,8], index: 3, kind: output, shape index: {1}]
  %4 = xla_tuple %s2, %s3
  %s5 = sld [smem:[#allocation0]]
  $region34: #{tpu_custom_call.1} parent=0
    _
  %s7 = ssub.s32 1, %s5
  %s8 = scalar_select 0, %s7, %s5
  $region1: #{tpu_custom_call.1} parent=0
    #allocation2 [shape = 'u8[8192]{0}', space=vmem, size = 0x2000, scoped, tag = 'input window, operand 0, single buffered']
    #allocation3 [shape = 's32[1]{0}', space=sflag, size = 0x4, scoped, tag = 'scoped memory for tpu_custom_call.1']
    #allocation4 [shape = 's32[1]{0}', space=sflag, size = 0x4, scoped, tag = 'scoped memory for tpu_custom_call.1']
    #allocation5 [shape = 'u8[8192]{0}', space=vmem, size = 0x2000, scoped, tag = 'input window, operand 1, single buffered']
    #allocation6 [shape = 's32[1]{0}', space=sflag, size = 0x4, scoped, tag = 'scoped memory for tpu_custom_call.1']
    #allocation7 [shape = 'u8[8192]{0}', space=vmem, size = 0x2000, scoped, tag = 'output window, operand 0, single buffered']
    #allocation8 [shape = 'u8[8192]{0}', space=vmem, size = 0x2000, scoped, tag = 'output window, operand 1, single buffered']
    #allocation9 [shape = 's32[1]{0}', space=sflag, size = 0x4, scoped, tag = 'scoped memory for tpu_custom_call.1']
    %9 = vsyncpa [#allocation3], 0
    %10 = vsyncpa [#allocation6], 0
    %11 = vsyncpa [#allocation4], 0
    %12 = vsyncpa [#allocation9], 0
    // Predicated region
    $region2: #{tpu_custom_call.1} parent=1 // pred_check
      _
    $region3: #{tpu_custom_call.1} parent=1 // pred_check_branch
      %14 = sbr.rel (0) target = $region5
    $region4: #{tpu_custom_call.1} parent=1 // pred_region
      %s16 = ssub.s32 256, 256
      %17 = vsyncadd [#allocation3], %s16
      %s18 = sshll.u32 [#allocation2], 4
      %s19 = int_to_ptr.vmem [resolvable:$true] %s18
      %24 = dma.hbm_to_vmem [thread:$0]  %s0, 256, %s19, [#allocation3], 128, 128, 8
    $region5: #{tpu_custom_call.1} parent=1 // pred_fallthru
      _
    // Predicated region
    $region6: #{tpu_custom_call.1} parent=1 // pred_check
      _
    $region7: #{tpu_custom_call.1} parent=1 // pred_check_branch
      %26 = sbr.rel (0) target = $region9
    $region8: #{tpu_custom_call.1} parent=1 // pred_region
      %s28 = ssub.s32 256, 256
      %29 = vsyncadd [#allocation6], %s28
      %s30 = sshll.u32 [#allocation5], 4
      %s31 = int_to_ptr.vmem [resolvable:$true] %s30
      %36 = dma.hbm_to_vmem [thread:$0]  %s1, 256, %s31, [#allocation6], 128, 128, 8
    $region9: #{tpu_custom_call.1} parent=1 // pred_fallthru
      _
    // Predicated region
    $region10: #{tpu_custom_call.1} parent=1 // pred_check
      _
    $region11: #{tpu_custom_call.1} parent=1 // pred_check_branch
      %38 = sbr.rel (0) target = $region13
    $region12: #{tpu_custom_call.1} parent=1 // pred_region
      %39 = dma.done [#allocation3], 256
    $region13: #{tpu_custom_call.1} parent=1 // pred_fallthru
      _
    // Predicated region
    $region14: #{tpu_custom_call.1} parent=1 // pred_check
      _
    $region15: #{tpu_custom_call.1} parent=1 // pred_check_branch
      %41 = sbr.rel (0) target = $region17
    $region16: #{tpu_custom_call.1} parent=1 // pred_region
      %42 = dma.done [#allocation6], 256
    $region17: #{tpu_custom_call.1} parent=1 // pred_fallthru
      _
    %v44 = vld [vmem:[#allocation2] sm:$0xff]
    %v45 = vld [vmem:[#allocation2 + $0x8] sm:$0xff]
    %v46 = vpack.c.bf16 %v44, %v44
    %v47 = vpack.c.bf16 %v45, %v45
    %v48 = vld [vmem:[#allocation5] sm:$0xff]
    %v49 = vld [vmem:[#allocation5 + $0x8] sm:$0xff]
    %v50 = vpack.c.bf16 %v48, %v48
    %v51 = vpack.c.bf16 %v49, %v49
    %vm52 = vcmask 261120
    %v54 = vsel %vm52, %v46, 0
    %v57 = vsel %vm52, %v50, 0
    %59 = vmatprep.subr.bf16.mxu0 0
    %60 = vmatpush1.bf16.xpose.msra.mxu0 0
    %61 = vmatprep.subr.bf16.mxu0 0
    %62 = vmatpush1.bf16.xpose.msra.mxu0 0
    %63 = vmatprep.subr.bf16.mxu0 0
    %64 = vmatpush1.bf16.xpose.msra.mxu0 0
    %65 = vmatprep.subr.bf16.mxu0 0
    %66 = vmatpush1.bf16.xpose.msra.mxu0 0
    %67 = vmatprep.subr.bf16.mxu0 0
    %68 = vmatpush1.bf16.xpose.msra.mxu0 0
    %69 = vmatprep.subr.bf16.mxu0 0
    %70 = vmatpush1.bf16.xpose.msra.mxu0 0
    %71 = vmatprep.subr.bf16.mxu0 0
    %72 = vmatpush1.bf16.xpose.msra.mxu0 0
    %73 = vmatprep.subr.bf16.mxu0 0
    %74 = vmatpush1.bf16.xpose.msra.mxu0 %v57
    %75 = vmatprep.subr.bf16.mxu0 0
    %76 = vmatpush2.bf16.xpose.msra.mxu0 0
    %77 = vmatprep.subr.bf16.mxu0 0
    %78 = vmatpush2.bf16.xpose.msra.mxu0 0
    %79 = vmatprep.subr.bf16.mxu0 0
    %80 = vmatpush2.bf16.xpose.msra.mxu0 0
    %81 = vmatprep.subr.bf16.mxu0 0
    %82 = vmatpush2.bf16.xpose.msra.mxu0 0
    %83 = vmatprep.subr.bf16.mxu0 0
    %84 = vmatpush2.bf16.xpose.msra.mxu0 0
    %85 = vmatprep.subr.bf16.mxu0 0
    %86 = vmatpush2.bf16.xpose.msra.mxu0 0
    %87 = vmatprep.subr.bf16.mxu0 0
    %88 = vmatpush2.bf16.xpose.msra.mxu0 0
    %89 = vmatprep.subr.bf16.mxu0 0
    %90 = vmatpush2.bf16.xpose.msra.mxu0 0
    %91 = vmatprep.mubr.bf16.mxu0 0
    %92 = vmatmul.mubr.bf16.gmra.mxu0 %v54
    %v93 = vpop.f32.mrf.mxu0
    %v94 = vadd.f32 0.0, %v93
    %v95 = vpop.f32.mrf.mxu0
    %v96 = vpop.f32.mrf.mxu0
    %v97 = vpop.f32.mrf.mxu0
    %98 = vdwg.mxu0
    %v100 = vsel %vm52, %v47, 0
    %v103 = vsel %vm52, %v51, 0
    %105 = vmatprep.subr.bf16.mxu0 0
    %106 = vmatpush1.bf16.xpose.msra.mxu0 0
    %107 = vmatprep.subr.bf16.mxu0 0
    %108 = vmatpush1.bf16.xpose.msra.mxu0 0
    %109 = vmatprep.subr.bf16.mxu0 0
    %110 = vmatpush1.bf16.xpose.msra.mxu0 0
    %111 = vmatprep.subr.bf16.mxu0 0
    %112 = vmatpush1.bf16.xpose.msra.mxu0 0
    %113 = vmatprep.subr.bf16.mxu0 0
    %114 = vmatpush1.bf16.xpose.msra.mxu0 0
    %115 = vmatprep.subr.bf16.mxu0 0
    %116 = vmatpush1.bf16.xpose.msra.mxu0 0
    %117 = vmatprep.subr.bf16.mxu0 0
    %118 = vmatpush1.bf16.xpose.msra.mxu0 0
    %119 = vmatprep.subr.bf16.mxu0 0
    %120 = vmatpush1.bf16.xpose.msra.mxu0 %v103
    %121 = vmatprep.subr.bf16.mxu0 0
    %122 = vmatpush2.bf16.xpose.msra.mxu0 0
    %123 = vmatprep.subr.bf16.mxu0 0
    %124 = vmatpush2.bf16.xpose.msra.mxu0 0
    %125 = vmatprep.subr.bf16.mxu0 0
    %126 = vmatpush2.bf16.xpose.msra.mxu0 0
    %127 = vmatprep.subr.bf16.mxu0 0
    %128 = vmatpush2.bf16.xpose.msra.mxu0 0
    %129 = vmatprep.subr.bf16.mxu0 0
    %130 = vmatpush2.bf16.xpose.msra.mxu0 0
    %131 = vmatprep.subr.bf16.mxu0 0
    %132 = vmatpush2.bf16.xpose.msra.mxu0 0
    %133 = vmatprep.subr.bf16.mxu0 0
    %134 = vmatpush2.bf16.xpose.msra.mxu0 0
    %135 = vmatprep.subr.bf16.mxu0 0
    %136 = vmatpush2.bf16.xpose.msra.mxu0 0
    %137 = vmatprep.mubr.bf16.mxu0 0
    %138 = vmatmul.mubr.bf16.gmra.mxu0 %v100
    %v139 = vpop.f32.mrf.mxu0
    %v140 = vadd.f32 0.0, %v139
    %v141 = vpop.f32.mrf.mxu0
    %v142 = vpop.f32.mrf.mxu0
    %v143 = vpop.f32.mrf.mxu0
    %144 = vdwg.mxu0
    %vm145 = vcmask 64512
    %v146 = vsel %vm145, %v94, -inf
    %147 = vmax.xlane.f32.xlu0 %v146
    %v148 = vpop.xlane.xlu0 %147
    %v149 = vsel %vm145, %v140, -inf
    %150 = vmax.xlane.f32.xlu0 %v149
    %v151 = vpop.xlane.xlu0 %150
    %v152 = vsub.f32 %v94, %v148
    %v153 = vsub.f32 %v140, %v151
    %v154 = vmul.f32 %v152, 1.442695
    %v155 = vpow.pop %v154
    %v156 = vmul.f32 %v153, 1.442695
    %v157 = vpow.pop %v156
    %v158 = vsel %vm145, %v155, 0.0
    %159 = vadd.xlane.f32.xlu0 %v158
    %v160 = vpop.xlane.xlu0 %159
    %v161 = vsel %vm145, %v157, 0.0
    %162 = vadd.xlane.f32.xlu0 %v161
    %v163 = vpop.xlane.xlu0 %162
    %v164 = vrcp.pop %v160
    %v165 = vrcp.pop %v163
    %v166 = vmul.f32 %v160, %v164
    %v167 = vmul.f32 %v163, %v165
    %v168 = vsub.f32 2.0, %v166
    %v169 = vsub.f32 2.0, %v167
    %v170 = vmul.f32 %v164, %v168
    %v171 = vmul.f32 %v165, %v169
    %v172 = vmul.f32 %v155, %v170
    %v173 = vmul.f32 %v157, %v171
    %v174 = vpack.c.bf16 %v172, %v172
    %v175 = vpack.c.bf16 %v173, %v173
    %v177 = vsel %vm145, %v174, 0
    %vm179 = vcmask 1043456
    %v180 = vsel %vm179, %v50, 0
    %182 = vmatprep.subr.bf16.mxu0 0
    %183 = vmatpush1.bf16.msra.mxu0 0
    %184 = vmatprep.subr.bf16.mxu0 0
    %185 = vmatpush1.bf16.msra.mxu0 0
    %186 = vmatprep.subr.bf16.mxu0 0
    %187 = vmatpush1.bf16.msra.mxu0 0
    %188 = vmatprep.subr.bf16.mxu0 0
    %189 = vmatpush1.bf16.msra.mxu0 0
    %190 = vmatprep.subr.bf16.mxu0 0
    %191 = vmatpush1.bf16.msra.mxu0 0
    %192 = vmatprep.subr.bf16.mxu0 0
    %193 = vmatpush1.bf16.msra.mxu0 0
    %194 = vmatprep.subr.bf16.mxu0 0
    %195 = vmatpush1.bf16.msra.mxu0 0
    %196 = vmatprep.subr.bf16.mxu0 0
    %197 = vmatpush1.bf16.msra.mxu0 %v180
    %198 = vmatprep.subr.bf16.mxu0 0
    %199 = vmatpush2.bf16.msra.mxu0 0
    %200 = vmatprep.subr.bf16.mxu0 0
    %201 = vmatpush2.bf16.msra.mxu0 0
    %202 = vmatprep.subr.bf16.mxu0 0
    %203 = vmatpush2.bf16.msra.mxu0 0
    %204 = vmatprep.subr.bf16.mxu0 0
    %205 = vmatpush2.bf16.msra.mxu0 0
    %206 = vmatprep.subr.bf16.mxu0 0
    %207 = vmatpush2.bf16.msra.mxu0 0
    %208 = vmatprep.subr.bf16.mxu0 0
    %209 = vmatpush2.bf16.msra.mxu0 0
    %210 = vmatprep.subr.bf16.mxu0 0
    %211 = vmatpush2.bf16.msra.mxu0 0
    %212 = vmatprep.subr.bf16.mxu0 0
    %213 = vmatpush2.bf16.msra.mxu0 0
    %214 = vmatprep.mubr.bf16.mxu0 0
    %215 = vmatmul.mubr.bf16.gmra.mxu0 %v177
    %v216 = vpop.f32.mrf.mxu0
    %v217 = vadd.f32 0.0, %v216
    %v218 = vpop.f32.mrf.mxu0
    %v219 = vpop.f32.mrf.mxu0
    %v220 = vpop.f32.mrf.mxu0
    %221 = vdwg.mxu0
    %v223 = vsel %vm145, %v175, 0
    %v225 = vsel %vm179, %v51, 0
    %227 = vmatprep.subr.bf16.mxu0 0
    %228 = vmatpush1.bf16.msra.mxu0 0
    %229 = vmatprep.subr.bf16.mxu0 0
    %230 = vmatpush1.bf16.msra.mxu0 0
    %231 = vmatprep.subr.bf16.mxu0 0
    %232 = vmatpush1.bf16.msra.mxu0 0
    %233 = vmatprep.subr.bf16.mxu0 0
    %234 = vmatpush1.bf16.msra.mxu0 0
    %235 = vmatprep.subr.bf16.mxu0 0
    %236 = vmatpush1.bf16.msra.mxu0 0
    %237 = vmatprep.subr.bf16.mxu0 0
    %238 = vmatpush1.bf16.msra.mxu0 0
    %239 = vmatprep.subr.bf16.mxu0 0
    %240 = vmatpush1.bf16.msra.mxu0 0
    %241 = vmatprep.subr.bf16.mxu0 0
    %242 = vmatpush1.bf16.msra.mxu0 %v225
    %243 = vmatprep.subr.bf16.mxu0 0
    %244 = vmatpush2.bf16.msra.mxu0 0
    %245 = vmatprep.subr.bf16.mxu0 0
    %246 = vmatpush2.bf16.msra.mxu0 0
    %247 = vmatprep.subr.bf16.mxu0 0
    %248 = vmatpush2.bf16.msra.mxu0 0
    %249 = vmatprep.subr.bf16.mxu0 0
    %250 = vmatpush2.bf16.msra.mxu0 0
    %251 = vmatprep.subr.bf16.mxu0 0
    %252 = vmatpush2.bf16.msra.mxu0 0
    %253 = vmatprep.subr.bf16.mxu0 0
    %254 = vmatpush2.bf16.msra.mxu0 0
    %255 = vmatprep.subr.bf16.mxu0 0
    %256 = vmatpush2.bf16.msra.mxu0 0
    %257 = vmatprep.subr.bf16.mxu0 0
    %258 = vmatpush2.bf16.msra.mxu0 0
    %259 = vmatprep.mubr.bf16.mxu0 0
    %260 = vmatmul.mubr.bf16.gmra.mxu0 %v223
    %v261 = vpop.f32.mrf.mxu0
    %v262 = vadd.f32 0.0, %v261
    %v263 = vpop.f32.mrf.mxu0
    %v264 = vpop.f32.mrf.mxu0
    %v265 = vpop.f32.mrf.mxu0
    %266 = vdwg.mxu0
    %267 = vst.msk [vmem:[#allocation8] sm:$0xff] %vm145, %v172
    %268 = vst.msk [vmem:[#allocation8 + $0x8] sm:$0xff] %vm145, %v173
    %269 = vst.msk [vmem:[#allocation7] sm:$0xff] %vm52, %v217
    %270 = vst.msk [vmem:[#allocation7 + $0x8] sm:$0xff] %vm52, %v262
    // Predicated region
    $region18: #{tpu_custom_call.1} parent=1 // pred_check
      _
    $region19: #{tpu_custom_call.1} parent=1 // pred_check_branch
      %272 = sbr.rel (0) target = $region21
    $region20: #{tpu_custom_call.1} parent=1 // pred_region
      %s274 = ssub.s32 256, 256
      %275 = vsyncadd [#allocation4], %s274
      %s276 = sshll.u32 [#allocation7], 4
      %s277 = int_to_ptr.vmem [resolvable:$true] %s276
      %282 = dma.vmem_to_hbm [thread:$0]  %s277, 256, %s2, [#allocation4], 128, 128, 8
    $region21: #{tpu_custom_call.1} parent=1 // pred_fallthru
      _
    // Predicated region
    $region22: #{tpu_custom_call.1} parent=1 // pred_check
      _
    $region23: #{tpu_custom_call.1} parent=1 // pred_check_branch
      %284 = sbr.rel (0) target = $region25
    $region24: #{tpu_custom_call.1} parent=1 // pred_region
      %s286 = ssub.s32 256, 256
      %287 = vsyncadd [#allocation9], %s286
      %s288 = sshll.u32 [#allocation8], 4
      %s289 = int_to_ptr.vmem [resolvable:$true] %s288
      %294 = dma.vmem_to_hbm [thread:$0]  %s289, 256, %s3, [#allocation9], 128, 128, 8
    $region25: #{tpu_custom_call.1} parent=1 // pred_fallthru
      _
    // Predicated region
    $region26: #{tpu_custom_call.1} parent=1 // pred_check
      _
    $region27: #{tpu_custom_call.1} parent=1 // pred_check_branch
      %296 = sbr.rel (0) target = $region29
    $region28: #{tpu_custom_call.1} parent=1 // pred_region
      %297 = dma.done [#allocation4], 256
    $region29: #{tpu_custom_call.1} parent=1 // pred_fallthru
      _
    // Predicated region
    $region30: #{tpu_custom_call.1} parent=1 // pred_check
      _
    $region31: #{tpu_custom_call.1} parent=1 // pred_check_branch
      %299 = sbr.rel (0) target = $region33
    $region32: #{tpu_custom_call.1} parent=1 // pred_region
      %300 = dma.done [#allocation9], 256
    $region33: #{tpu_custom_call.1} parent=1 // pred_fallthru
      _
    %301 = vsyncpa [#allocation3], 1
    %302 = vsyncpa [#allocation6], 1
    %303 = vsyncpa [#allocation4], 1
    %304 = vsyncpa [#allocation9], 1

</llo_original>
